<compile_context>
chip_gen: v6e
topology: v6e:2x2x1
jax: 0.10.0
libtpu: 0.0.40
codegen_flags: <defaults>
</compile_context>

<pallas_src>
import functools

import jax
import jax.numpy as jnp
from jax.experimental import pallas as pl
from jax.experimental.pallas import tpu as pltpu


def _round_up(v: int, m: int) -> int:
    return (v + m - 1) // m * m


def _vmem_budget_bytes() -> int:
    """Generation-aware VMEM budget with headroom for scratch/semaphores."""
    try:
        cap = int(pltpu.get_tpu_info().vmem_capacity_bytes)
    except Exception:
        cap = 64 * 1024 * 1024  # conservative fallback: v7x per-TensorCore VMEM
    if cap <= 0:
        cap = 64 * 1024 * 1024
    # ~80% of physical; v7x (64 MiB) -> ~51 MiB, v5e/v6e (128 MiB) -> ~104 MiB.
    return min(int(cap * 0.8), 104 * 1024 * 1024)


def _resident_weight_spec(shape):
    """Weight BlockSpec: constant index_map, single-buffered (no re-DMA)."""
    try:
        return pl.BlockSpec(shape, lambda i: (0, 0), pipeline_mode=pl.Buffered(1))
    except TypeError:  # older jax without pipeline_mode on BlockSpec
        return pl.BlockSpec(shape, lambda i: (0, 0))


def _projection_kernel(x_ref, w1t_ref, w2t_ref, o_ref, *, compute_dtype):
    # x_ref:   (tb, input_dim)   batch tile of activations (native dtype)
    # w1t_ref: (input_dim, out_p) first weight, pre-transposed / pre-cast
    # w2t_ref: (out_p, out_p)     second weight, pre-transposed / pre-cast
    # o_ref:   (tb, out_p)
    x = x_ref[...].astype(compute_dtype)

    # First linear (no bias): MXU matmul with f32 accumulation.
    h = jnp.dot(x, w1t_ref[...], preferred_element_type=jnp.float32)
    # ReLU on the f32 accumulator (VPU).
    h = jnp.maximum(h, 0.0)
    # Second linear (no bias): downcast operands, f32 accumulation.
    out = jnp.dot(h.astype(w2t_ref.dtype), w2t_ref[...],
                  preferred_element_type=jnp.float32)

    o_ref[...] = out.astype(o_ref.dtype)


def prepare_projection_weights(w1, w2, *, compute_dtype=jnp.bfloat16):
    """Transpose / cast / lane-pad the two Linear weights ONCE per weight update.

    w1: (output_dim, input_dim)   PyTorch Linear weight (bias=False)
    w2: (output_dim, output_dim)
    Returns (w1t, w2t) with shapes (input_dim, out_p) and (out_p, out_p),
    out_p = round_up(output_dim, 128), so the kernel's stores stay lane-dense
    and no per-grid-step transpose is ever emitted.
    """
    output_dim, input_dim = w1.shape
    assert w2.shape == (output_dim, output_dim)
    out_p = _round_up(output_dim, 128)
    w1t = jnp.transpose(w1).astype(compute_dtype)   # (input_dim, output_dim)
    w2t = jnp.transpose(w2).astype(compute_dtype)   # (output_dim, output_dim)
    if out_p != output_dim:
        w1t = jnp.pad(w1t, ((0, 0), (0, out_p - output_dim)))
        w2t = jnp.pad(w2t, ((0, out_p - output_dim), (0, out_p - output_dim)))
    return w1t, w2t


def projection_apply(x, w1t, w2t, output_dim, *, tile_b=512, out_dtype=None):
    """Run the projection head on pre-prepared (transposed/cast/padded) weights."""
    B, input_dim = x.shape
    in_dim, out_p = w1t.shape
    assert in_dim == input_dim
    assert w2t.shape == (out_p, out_p)
    out_dtype = out_dtype or x.dtype
    compute_dtype = w1t.dtype

    # --- batch tile selection (no batch padding) ------------------------------
    # Multiple of 8 sublanes; >=2 grid steps when B permits (v7x megacore);
    # capped by tile_b and shrunk to fit the VMEM budget.
    sub = 8
    tb = min(int(tile_b), _round_up(pl.cdiv(B, 2), sub))
    tb = max(tb, sub)

    budget = _vmem_budget_bytes()
    w_item = jnp.dtype(compute_dtype).itemsize
    x_item = jnp.dtype(x.dtype).itemsize
    o_item = jnp.dtype(out_dtype).itemsize
    weight_bytes = (input_dim * out_p + out_p * out_p) * w_item  # single-buffered

    def _act_bytes(t):
        # double-buffered x and out tiles + f32 intermediate headroom
        return 2 * t * input_dim * x_item + 2 * t * out_p * o_item + 2 * t * out_p * 4

    while tb > sub and weight_bytes + _act_bytes(tb) > budget:
        tb = max(sub, _round_up(tb // 2, sub))
    # TODO(synk): add a K-tiled fallback (extra "arbitrary" grid axis over
    # input_dim + f32 VMEM accumulator) for heads whose weights alone exceed
    # the VMEM budget (e.g. f32 4096x4096 on v7x).

    if tb >= B:
        tb = B  # single full-batch block (block dim == full array dim is legal)
    grid = (pl.cdiv(B, tb),)

    flops = 2 * B * input_dim * out_p + 2 * B * out_p * out_p
    bytes_accessed = (x.size * x_item + w1t.size * w_item + w2t.size * w_item
                      + B * out_p * o_item)

    out = pl.pallas_call(
        functools.partial(_projection_kernel, compute_dtype=compute_dtype),
        out_shape=jax.ShapeDtypeStruct((B, out_p), out_dtype),
        grid_spec=pltpu.PrefetchScalarGridSpec(
            num_scalar_prefetch=0,
            grid=grid,
            in_specs=[
                # batch-tiled activations (double-buffered; trailing partial
                # block is masked by Pallas — no wrapper-side padding of x)
                pl.BlockSpec((tb, input_dim), lambda i: (i, 0)),
                # resident weights, single-buffered (constant index_map)
                _resident_weight_spec((input_dim, out_p)),
                _resident_weight_spec((out_p, out_p)),
            ],
            out_specs=pl.BlockSpec((tb, out_p), lambda i: (i, 0)),
        ),
        compiler_params=pltpu.CompilerParams(
            dimension_semantics=("parallel",),
            vmem_limit_bytes=budget,
        ),
        cost_estimate=pl.CostEstimate(
            flops=flops, transcendentals=0, bytes_accessed=bytes_accessed),
    )(x, w1t, w2t)

    if out_p != output_dim:
        out = out[:, :output_dim]
    return out


def projection_module(x, w1, w2, *, compute_dtype=None, tile_b=512, out_dtype=None):
    """Pallas implementation of ProjectionModule.forward: relu(x @ w1.T) @ w2.T.

    x:  (B, input_dim)
    w1: (output_dim, input_dim)   first Linear weight (PyTorch layout, bias=False)
    w2: (output_dim, output_dim)  second Linear weight (bias=False)
    compute_dtype: MXU operand dtype. Defaults to bf16 when x is f32 (f32
                   accumulation is preserved); pass jnp.float32 for exact math.
    out_dtype:     output dtype (defaults to x.dtype); bf16 halves writeback.
    For repeated calls with fixed weights, call prepare_projection_weights()
    once and use projection_apply() directly.
    """
    output_dim = w1.shape[0]
    if compute_dtype is None:
        compute_dtype = jnp.bfloat16 if x.dtype == jnp.float32 else x.dtype
    w1t, w2t = prepare_projection_weights(w1, w2, compute_dtype=compute_dtype)
    return projection_apply(x, w1t, w2t, output_dim, tile_b=tile_b, out_dtype=out_dtype)


def projection_ref(x, w1, w2):
    """Pure-JAX reference matching PyTorch semantics."""
    h = jnp.maximum(x @ w1.T, 0.0)
    return h @ w2.T


if __name__ == "__main__":
    key = jax.random.PRNGKey(0)
    kx, k1, k2 = jax.random.split(key, 3)

    # Small shapes consistent with the module (output_dim defaults to input_dim).
    batch, input_dim, output_dim = 8, 128, 128
    x = jax.random.normal(kx, (batch, input_dim), dtype=jnp.float32)
    b1 = 1.0 / (input_dim ** 0.5)
    w1 = jax.random.uniform(k1, (output_dim, input_dim), jnp.float32, -b1, b1)
    b2 = 1.0 / (output_dim ** 0.5)
    w2 = jax.random.uniform(k2, (output_dim, output_dim), jnp.float32, -b2, b2)

    ref = projection_ref(x, w1, w2)

    # Default path: bf16 MXU operands, f32 accumulation, f32 output.
    out = jax.block_until_ready(projection_module(x, w1, w2))
    assert out.shape == (batch, output_dim)
    assert jnp.allclose(out, ref, atol=1e-1, rtol=2e-2), "bf16 mismatch vs reference"

    # Full f32 path (tight check of kernel math / layout handling).
    out32 = jax.block_until_ready(
        projection_module(x, w1, w2, compute_dtype=jnp.float32))
    assert jnp.allclose(out32, ref, atol=1e-4, rtol=1e-4), "f32 mismatch vs reference"

    # Unaligned feature dims exercise lane-padding of the weights + output slice.
    x2 = jax.random.normal(kx, (6, 96), dtype=jnp.float32)
    w1b = jax.random.uniform(k1, (80, 96), jnp.float32, -0.1, 0.1)
    w2b = jax.random.uniform(k2, (80, 80), jnp.float32, -0.1, 0.1)
    out2 = jax.block_until_ready(
        projection_module(x2, w1b, w2b, compute_dtype=jnp.float32))
    ref2 = projection_ref(x2, w1b, w2b)
    assert out2.shape == (6, 80)
    assert jnp.allclose(out2, ref2, atol=1e-4, rtol=1e-4), "padded-shape mismatch"

    # Multi-step grid with a partial trailing batch block (no batch padding).
    x3 = jax.random.normal(kx, (40, 256), dtype=jnp.float32)
    w1c = jax.random.uniform(k1, (128, 256), jnp.float32, -0.05, 0.05)
    w2c = jax.random.uniform(k2, (128, 128), jnp.float32, -0.05, 0.05)
    out3 = jax.block_until_ready(
        projection_module(x3, w1c, w2c, compute_dtype=jnp.float32, tile_b=16))
    ref3 = projection_ref(x3, w1c, w2c)
    assert out3.shape == (40, 128)
    assert jnp.allclose(out3, ref3, atol=1e-4, rtol=1e-4), "partial-block mismatch"

    print("KERNEL_OK")
</pallas_src>

<mosaic_0001>
module attributes {stable_mosaic.version = 11 : i64} {
  func.func @_projection_kernel(%arg0: i32, %arg1: memref<8x128xf32, #tpu.memory_space<vmem>>, %arg2: memref<128x128xbf16, #tpu.memory_space<vmem>>, %arg3: memref<128x128xbf16, #tpu.memory_space<vmem>>, %arg4: memref<8x128xf32, #tpu.memory_space<vmem>>) attributes {dimension_semantics = [#tpu.dimension_semantics<parallel>], iteration_bounds = array<i64: 1>, scalar_prefetch = 0 : i64, scratch_operands = 0 : i64, tpu.core_type = #tpu.core_type<tc>, window_params = [{transform_indices = @transform_0, window_bounds = array<i64: 8, 128>}, {pipeline_mode = #tpu.pipeline_mode<synchronous>, transform_indices = @transform_1, window_bounds = array<i64: 128, 128>}, {pipeline_mode = #tpu.pipeline_mode<synchronous>, transform_indices = @transform_2, window_bounds = array<i64: 128, 128>}, {transform_indices = @transform_3, window_bounds = array<i64: 8, 128>}]} {
    %c0 = arith.constant 0 : index
    %c0_0 = arith.constant 0 : index
    %0 = vector.load %arg1[%c0, %c0_0] : memref<8x128xf32, #tpu.memory_space<vmem>>, vector<8x128xf32>
    %1 = arith.truncf %0 : vector<8x128xf32> to vector<8x128xbf16>
    %c0_1 = arith.constant 0 : index
    %c0_2 = arith.constant 0 : index
    %2 = vector.load %arg2[%c0_1, %c0_2] : memref<128x128xbf16, #tpu.memory_space<vmem>>, vector<128x128xbf16>
    %cst = arith.constant dense<0.000000e+00> : vector<8x128xf32>
    %3 = tpu.matmul %1, %2, %cst {dimension_numbers = #tpu.dot_dimension_numbers<[1], [0], [0], [1], [0, 0, 1, 1], [], []>} : vector<8x128xbf16>, vector<128x128xbf16>, vector<8x128xf32> -> vector<8x128xf32>
    %cst_3 = arith.constant 0.000000e+00 : f32
    %4 = vector.broadcast %cst_3 : f32 to vector<8x128xf32>
    %5 = arith.maximumf %3, %4 : vector<8x128xf32>
    %6 = arith.truncf %5 : vector<8x128xf32> to vector<8x128xbf16>
    %c0_4 = arith.constant 0 : index
    %c0_5 = arith.constant 0 : index
    %7 = vector.load %arg3[%c0_4, %c0_5] : memref<128x128xbf16, #tpu.memory_space<vmem>>, vector<128x128xbf16>
    %cst_6 = arith.constant dense<0.000000e+00> : vector<8x128xf32>
    %8 = tpu.matmul %6, %7, %cst_6 {dimension_numbers = #tpu.dot_dimension_numbers<[1], [0], [0], [1], [0, 0, 1, 1], [], []>} : vector<8x128xbf16>, vector<128x128xbf16>, vector<8x128xf32> -> vector<8x128xf32>
    %c0_7 = arith.constant 0 : index
    %c0_8 = arith.constant 0 : index
    %9 = vector.load %arg4[%c0_7, %c0_8] : memref<8x128xf32, #tpu.memory_space<vmem>>, vector<8x128xf32>
    tpu.vector_store %arg4[%c0_7, %c0_8], %8 {strides = array<i32>} : memref<8x128xf32, #tpu.memory_space<vmem>>, vector<8x128xf32>,
    return
  }
  func.func @transform_0(%arg0: i32) -> (i32, i32) {
    %c0_i32 = arith.constant 0 : i32
    %c0_i32_0 = arith.constant 0 : i32
    return %arg0, %c0_i32 : i32, i32
  }
  func.func @transform_1(%arg0: i32) -> (i32, i32) {
    %c0_i32 = arith.constant 0 : i32
    %c0_i32_0 = arith.constant 0 : i32
    %c0_i32_1 = arith.constant 0 : i32
    return %c0_i32, %c0_i32_0 : i32, i32
  }
  func.func @transform_2(%arg0: i32) -> (i32, i32) {
    %c0_i32 = arith.constant 0 : i32
    %c0_i32_0 = arith.constant 0 : i32
    %c0_i32_1 = arith.constant 0 : i32
    return %c0_i32, %c0_i32_0 : i32, i32
  }
  func.func @transform_3(%arg0: i32) -> (i32, i32) {
    %c0_i32 = arith.constant 0 : i32
    %c0_i32_0 = arith.constant 0 : i32
    return %arg0, %c0_i32 : i32, i32
  }
}

</mosaic_0001>

<llo_original>
// kernel: tpu_custom_call.1
$region0: #{tpu_custom_call.1}
  #allocation0 [shape = 'u32[]', space=smem, size = 0x4, offset = 0x4, fixed_abs, tag = 'smem constant byte address 0x4 - core index']
  #allocation1 [shape = 'u32[144,128]{1,0:T(1,128)}', space=vmem, size = 0x12000, scoped, tag = 'internal scratch']
  %s0 = inlined_call_operand.hbm [shape: f32[8,128], index: 0, kind: input, shape index: {}]
  %s1 = inlined_call_operand.hbm [shape: bf16[128,128], index: 1, kind: input, shape index: {}]
  %s2 = inlined_call_operand.hbm [shape: bf16[128,128], index: 2, kind: input, shape index: {}]
  %s3 = inlined_call_operand.hbm [shape: f32[8,128], index: 3, kind: output, shape index: {}]
  %s4 = sld [smem:[#allocation0]]
  $region34: #{tpu_custom_call.1} parent=0
    _
  %s6 = ssub.s32 1, %s4
  %s7 = scalar_select 0, %s6, %s4
  $region1: #{tpu_custom_call.1} parent=0
    #allocation2 [shape = 'u8[4096]{0}', space=vmem, size = 0x1000, scoped, tag = 'input window, operand 0, single buffered']
    #allocation3 [shape = 's32[1]{0}', space=sflag, size = 0x4, scoped, tag = 'scoped memory for tpu_custom_call.1']
    #allocation4 [shape = 's32[1]{0}', space=sflag, size = 0x4, scoped, tag = 'scoped memory for tpu_custom_call.1']
    #allocation5 [shape = 'u8[32768]{0}', space=vmem, size = 0x8000, scoped, tag = 'input window, operand 1, single buffered']
    #allocation6 [shape = 's32[1]{0}', space=sflag, size = 0x4, scoped, tag = 'scoped memory for tpu_custom_call.1']
    #allocation7 [shape = 'u8[32768]{0}', space=vmem, size = 0x8000, scoped, tag = 'input window, operand 2, single buffered']
    #allocation8 [shape = 'u8[4096]{0}', space=vmem, size = 0x1000, scoped, tag = 'output window, operand 0, single buffered']
    %8 = vsyncpa [#allocation3], 0
    %9 = vsyncpa [#allocation6], 0
    %10 = vsyncpa [#allocation4], 0
    // Predicated region
    $region2: #{tpu_custom_call.1} parent=1 // pred_check
      _
    $region3: #{tpu_custom_call.1} parent=1 // pred_check_branch
      %12 = sbr.rel (0) target = $region5
    $region4: #{tpu_custom_call.1} parent=1 // pred_region
      %s14 = ssub.s32 128, 128
      %15 = vsyncadd [#allocation3], %s14
      %s17 = sshll.u32 [#allocation2], 4
      %s18 = int_to_ptr.vmem [resolvable:$true] %s17
      %20 = dma.hbm_to_vmem [thread:$0]  %s0, 128, %s18, [#allocation3]
    $region5: #{tpu_custom_call.1} parent=1 // pred_fallthru
      _
    // Predicated region
    $region6: #{tpu_custom_call.1} parent=1 // pred_check
      _
    $region7: #{tpu_custom_call.1} parent=1 // pred_check_branch
      %22 = sbr.rel (0) target = $region9
    $region8: #{tpu_custom_call.1} parent=1 // pred_region
      %s24 = ssub.s32 1024, 1024
      %25 = vsyncadd [#allocation6], %s24
      %s26 = sshll.u32 [#allocation5], 4
      %s27 = int_to_ptr.vmem [resolvable:$true] %s26
      %32 = dma.hbm_to_vmem [thread:$0]  %s1, 1024, %s27, [#allocation6], 64, 64, 4
    $region9: #{tpu_custom_call.1} parent=1 // pred_fallthru
      _
    // Predicated region
    $region10: #{tpu_custom_call.1} parent=1 // pred_check
      _
    $region11: #{tpu_custom_call.1} parent=1 // pred_check_branch
      %34 = sbr.rel (0) target = $region13
    $region12: #{tpu_custom_call.1} parent=1 // pred_region
      %s36 = ssub.s32 1024, 1024
      %37 = vsyncadd [#allocation6], %s36
      %s38 = sshll.u32 [#allocation7], 4
      %s39 = int_to_ptr.vmem [resolvable:$true] %s38
      %44 = dma.hbm_to_vmem [thread:$0]  %s2, 1024, %s39, [#allocation6], 64, 64, 4
    $region13: #{tpu_custom_call.1} parent=1 // pred_fallthru
      _
    // Predicated region
    $region14: #{tpu_custom_call.1} parent=1 // pred_check
      _
    $region15: #{tpu_custom_call.1} parent=1 // pred_check_branch
      %46 = sbr.rel (0) target = $region17
    $region16: #{tpu_custom_call.1} parent=1 // pred_region
      %47 = dma.done [#allocation3], 128
    $region17: #{tpu_custom_call.1} parent=1 // pred_fallthru
      _
    // Predicated region
    $region18: #{tpu_custom_call.1} parent=1 // pred_check
      _
    $region19: #{tpu_custom_call.1} parent=1 // pred_check_branch
      %49 = sbr.rel (0) target = $region21
    $region20: #{tpu_custom_call.1} parent=1 // pred_region
      %50 = dma.done [#allocation6], 1024
    $region21: #{tpu_custom_call.1} parent=1 // pred_fallthru
      _
    // Predicated region
    $region22: #{tpu_custom_call.1} parent=1 // pred_check
      _
    $region23: #{tpu_custom_call.1} parent=1 // pred_check_branch
      %52 = sbr.rel (0) target = $region25
    $region24: #{tpu_custom_call.1} parent=1 // pred_region
      %53 = dma.done [#allocation6], 1024
    $region25: #{tpu_custom_call.1} parent=1 // pred_fallthru
      _
    %v55 = vld [vmem:[#allocation2] sm:$0xff]
    %v56 = vpack.c.bf16 %v55, %v55
    %v57 = vld [vmem:[#allocation5] sm:$0xf]
    %v58 = vld [vmem:[#allocation5 + $0x4] sm:$0xf]
    %v59 = vld [vmem:[#allocation5 + $0x8] sm:$0xf]
    %v60 = vld [vmem:[#allocation5 + $0xc] sm:$0xf]
    %v61 = vld [vmem:[#allocation5 + $0x10] sm:$0xf]
    %v62 = vld [vmem:[#allocation5 + $0x14] sm:$0xf]
    %v63 = vld [vmem:[#allocation5 + $0x18] sm:$0xf]
    %v64 = vld [vmem:[#allocation5 + $0x1c] sm:$0xf]
    %v65 = vld [vmem:[#allocation5 + $0x20] sm:$0xf]
    %v66 = vld [vmem:[#allocation5 + $0x24] sm:$0xf]
    %v67 = vld [vmem:[#allocation5 + $0x28] sm:$0xf]
    %v68 = vld [vmem:[#allocation5 + $0x2c] sm:$0xf]
    %v69 = vld [vmem:[#allocation5 + $0x30] sm:$0xf]
    %v70 = vld [vmem:[#allocation5 + $0x34] sm:$0xf]
    %v71 = vld [vmem:[#allocation5 + $0x38] sm:$0xf]
    %v72 = vld [vmem:[#allocation5 + $0x3c] sm:$0xf]
    %v89 = vunpack.c.l.b16 %v57
    %v90 = vunpack.c.l.b16 %v58
    %v91 = vunpack.c.l.b16 %v59
    %v92 = vunpack.c.l.b16 %v60
    %v93 = vunpack.c.l.b16 %v61
    %v94 = vunpack.c.l.b16 %v62
    %v95 = vunpack.c.l.b16 %v63
    %v96 = vunpack.c.l.b16 %v64
    %v97 = vunpack.c.l.b16 %v65
    %v98 = vunpack.c.l.b16 %v66
    %v99 = vunpack.c.l.b16 %v67
    %v100 = vunpack.c.l.b16 %v68
    %v101 = vunpack.c.l.b16 %v69
    %v102 = vunpack.c.l.b16 %v70
    %v103 = vunpack.c.l.b16 %v71
    %v104 = vunpack.c.l.b16 %v72
    %v105 = vpack.c.b16 %v90, %v89
    %v106 = vpack.c.b16 %v92, %v91
    %v107 = vpack.c.b16 %v94, %v93
    %v108 = vpack.c.b16 %v96, %v95
    %v109 = vpack.c.b16 %v98, %v97
    %v110 = vpack.c.b16 %v100, %v99
    %v111 = vpack.c.b16 %v102, %v101
    %v112 = vpack.c.b16 %v104, %v103
    %121 = vmatprep.subr.bf16.mxu0 0
    %122 = vmatpush1.bf16.msra.mxu0 %v112
    %123 = vmatprep.subr.bf16.mxu0 0
    %124 = vmatpush1.bf16.msra.mxu0 %v111
    %125 = vmatprep.subr.bf16.mxu0 0
    %126 = vmatpush1.bf16.msra.mxu0 %v110
    %127 = vmatprep.subr.bf16.mxu0 0
    %128 = vmatpush1.bf16.msra.mxu0 %v109
    %129 = vmatprep.subr.bf16.mxu0 0
    %130 = vmatpush1.bf16.msra.mxu0 %v108
    %131 = vmatprep.subr.bf16.mxu0 0
    %132 = vmatpush1.bf16.msra.mxu0 %v107
    %133 = vmatprep.subr.bf16.mxu0 0
    %134 = vmatpush1.bf16.msra.mxu0 %v106
    %135 = vmatprep.subr.bf16.mxu0 0
    %136 = vmatpush1.bf16.msra.mxu0 %v105
    %137 = vmatprep.subr.bf16.mxu0 0
    %138 = vmatpush2.bf16.msra.mxu0 0
    %139 = vmatprep.subr.bf16.mxu0 0
    %140 = vmatpush2.bf16.msra.mxu0 0
    %141 = vmatprep.subr.bf16.mxu0 0
    %142 = vmatpush2.bf16.msra.mxu0 0
    %143 = vmatprep.subr.bf16.mxu0 0
    %144 = vmatpush2.bf16.msra.mxu0 0
    %145 = vmatprep.subr.bf16.mxu0 0
    %146 = vmatpush2.bf16.msra.mxu0 0
    %147 = vmatprep.subr.bf16.mxu0 0
    %148 = vmatpush2.bf16.msra.mxu0 0
    %149 = vmatprep.subr.bf16.mxu0 0
    %150 = vmatpush2.bf16.msra.mxu0 0
    %151 = vmatprep.subr.bf16.mxu0 0
    %152 = vmatpush2.bf16.msra.mxu0 0
    %153 = vmatprep.mubr.bf16.mxu0 0
    %154 = vmatmul.mubr.bf16.gmra.mxu0 %v56
    %v155 = vpop.f32.mrf.mxu0
    %v156 = vadd.f32 0.0, %v155
    %v157 = vpop.f32.mrf.mxu0
    %v158 = vpop.f32.mrf.mxu0
    %v159 = vpop.f32.mrf.mxu0
    %160 = vdwg.mxu0
    %v161 = vmax.f32 %v156, 0.0
    %v162 = vpack.c.bf16 %v161, %v161
    %v163 = vld [vmem:[#allocation7] sm:$0xf]
    %v164 = vld [vmem:[#allocation7 + $0x4] sm:$0xf]
    %v165 = vld [vmem:[#allocation7 + $0x8] sm:$0xf]
    %v166 = vld [vmem:[#allocation7 + $0xc] sm:$0xf]
    %v167 = vld [vmem:[#allocation7 + $0x10] sm:$0xf]
    %v168 = vld [vmem:[#allocation7 + $0x14] sm:$0xf]
    %v169 = vld [vmem:[#allocation7 + $0x18] sm:$0xf]
    %v170 = vld [vmem:[#allocation7 + $0x1c] sm:$0xf]
    %v171 = vld [vmem:[#allocation7 + $0x20] sm:$0xf]
    %v172 = vld [vmem:[#allocation7 + $0x24] sm:$0xf]
    %v173 = vld [vmem:[#allocation7 + $0x28] sm:$0xf]
    %v174 = vld [vmem:[#allocation7 + $0x2c] sm:$0xf]
    %v175 = vld [vmem:[#allocation7 + $0x30] sm:$0xf]
    %v176 = vld [vmem:[#allocation7 + $0x34] sm:$0xf]
    %v177 = vld [vmem:[#allocation7 + $0x38] sm:$0xf]
    %v178 = vld [vmem:[#allocation7 + $0x3c] sm:$0xf]
    %v195 = vunpack.c.l.b16 %v163
    %v196 = vunpack.c.l.b16 %v164
    %v197 = vunpack.c.l.b16 %v165
    %v198 = vunpack.c.l.b16 %v166
    %v199 = vunpack.c.l.b16 %v167
    %v200 = vunpack.c.l.b16 %v168
    %v201 = vunpack.c.l.b16 %v169
    %v202 = vunpack.c.l.b16 %v170
    %v203 = vunpack.c.l.b16 %v171
    %v204 = vunpack.c.l.b16 %v172
    %v205 = vunpack.c.l.b16 %v173
    %v206 = vunpack.c.l.b16 %v174
    %v207 = vunpack.c.l.b16 %v175
    %v208 = vunpack.c.l.b16 %v176
    %v209 = vunpack.c.l.b16 %v177
    %v210 = vunpack.c.l.b16 %v178
    %v211 = vpack.c.b16 %v196, %v195
    %v212 = vpack.c.b16 %v198, %v197
    %v213 = vpack.c.b16 %v200, %v199
    %v214 = vpack.c.b16 %v202, %v201
    %v215 = vpack.c.b16 %v204, %v203
    %v216 = vpack.c.b16 %v206, %v205
    %v217 = vpack.c.b16 %v208, %v207
    %v218 = vpack.c.b16 %v210, %v209
    %227 = vmatprep.subr.bf16.mxu0 0
    %228 = vmatpush1.bf16.msra.mxu0 %v218
    %229 = vmatprep.subr.bf16.mxu0 0
    %230 = vmatpush1.bf16.msra.mxu0 %v217
    %231 = vmatprep.subr.bf16.mxu0 0
    %232 = vmatpush1.bf16.msra.mxu0 %v216
    %233 = vmatprep.subr.bf16.mxu0 0
    %234 = vmatpush1.bf16.msra.mxu0 %v215
    %235 = vmatprep.subr.bf16.mxu0 0
    %236 = vmatpush1.bf16.msra.mxu0 %v214
    %237 = vmatprep.subr.bf16.mxu0 0
    %238 = vmatpush1.bf16.msra.mxu0 %v213
    %239 = vmatprep.subr.bf16.mxu0 0
    %240 = vmatpush1.bf16.msra.mxu0 %v212
    %241 = vmatprep.subr.bf16.mxu0 0
    %242 = vmatpush1.bf16.msra.mxu0 %v211
    %243 = vmatprep.subr.bf16.mxu0 0
    %244 = vmatpush2.bf16.msra.mxu0 0
    %245 = vmatprep.subr.bf16.mxu0 0
    %246 = vmatpush2.bf16.msra.mxu0 0
    %247 = vmatprep.subr.bf16.mxu0 0
    %248 = vmatpush2.bf16.msra.mxu0 0
    %249 = vmatprep.subr.bf16.mxu0 0
    %250 = vmatpush2.bf16.msra.mxu0 0
    %251 = vmatprep.subr.bf16.mxu0 0
    %252 = vmatpush2.bf16.msra.mxu0 0
    %253 = vmatprep.subr.bf16.mxu0 0
    %254 = vmatpush2.bf16.msra.mxu0 0
    %255 = vmatprep.subr.bf16.mxu0 0
    %256 = vmatpush2.bf16.msra.mxu0 0
    %257 = vmatprep.subr.bf16.mxu0 0
    %258 = vmatpush2.bf16.msra.mxu0 0
    %259 = vmatprep.mubr.bf16.mxu0 0
    %260 = vmatmul.mubr.bf16.gmra.mxu0 %v162
    %v261 = vpop.f32.mrf.mxu0
    %v262 = vadd.f32 0.0, %v261
    %v263 = vpop.f32.mrf.mxu0
    %v264 = vpop.f32.mrf.mxu0
    %v265 = vpop.f32.mrf.mxu0
    %266 = vdwg.mxu0
    %267 = vst [vmem:[#allocation8] sm:$0xff] %v262
    // Predicated region
    $region26: #{tpu_custom_call.1} parent=1 // pred_check
      _
    $region27: #{tpu_custom_call.1} parent=1 // pred_check_branch
      %269 = sbr.rel (0) target = $region29
    $region28: #{tpu_custom_call.1} parent=1 // pred_region
      %s271 = ssub.s32 128, 128
      %272 = vsyncadd [#allocation4], %s271
      %s274 = sshll.u32 [#allocation8], 4
      %s275 = int_to_ptr.vmem [resolvable:$true] %s274
      %277 = dma.vmem_to_hbm [thread:$0]  %s275, 128, %s3, [#allocation4]
    $region29: #{tpu_custom_call.1} parent=1 // pred_fallthru
      _
    // Predicated region
    $region30: #{tpu_custom_call.1} parent=1 // pred_check
      _
    $region31: #{tpu_custom_call.1} parent=1 // pred_check_branch
      %279 = sbr.rel (0) target = $region33
    $region32: #{tpu_custom_call.1} parent=1 // pred_region
      %280 = dma.done [#allocation4], 128
    $region33: #{tpu_custom_call.1} parent=1 // pred_fallthru
      _
    %281 = vsyncpa [#allocation3], 1
    %282 = vsyncpa [#allocation6], 1
    %283 = vsyncpa [#allocation4], 1

</llo_original>
